<compile_context>
chip_gen: v7x
topology: tpu7x:2x2x1
jax: 0.10.0
libtpu: 0.0.40
codegen_flags: <defaults>
</compile_context>

<pallas_src>
import numpy as np
import jax
import jax.numpy as jnp
from jax import lax
from jax.experimental import pallas as pl
from jax.experimental.pallas import tpu as pltpu

N_POP = 1000.0     # the constant N in the reference script
HP = 128           # padded feature width (lane dim)
N_LAYERS = 6       # Linear(1,50), 4x Linear(50,50), Linear(50,2)


def _sir_mlp_kernel(t_ref, w_ref, b_ref, out_ref):
    # t_ref: (TB, 1)   w_ref: (6, 128, 128)   b_ref: (8, 128)   out_ref: (TB, 128)
    t_col = t_ref[...]                                      # (TB, 1)

    # Layer 1: Linear(1,50)+ReLU as a VPU rank-1 expression (only row 0 of the
    # padded weight is nonzero), avoiding an MXU matmul on a 1-wide K dim.
    w1_row = w_ref[0, 0:1, :]                               # (1, 128)
    h = jnp.maximum(t_col * w1_row + b_ref[0:1, :], 0.0)    # (TB, 128)

    # Layers 2..5: dense (TB,128)x(128,128) MXU matmuls + ReLU.
    for li in range(1, N_LAYERS - 1):
        y = jnp.dot(h, w_ref[li], preferred_element_type=jnp.float32)
        h = jnp.maximum(y + b_ref[li:li + 1, :], 0.0)

    # Layer 6: Linear(50,2), no activation. Lanes >= 2 are exactly zero.
    ir = jnp.dot(h, w_ref[N_LAYERS - 1], preferred_element_type=jnp.float32)
    ir = ir + b_ref[N_LAYERS - 1:N_LAYERS, :]               # (TB, 128)

    # Pack outputs into one lane-dense tile: lane 0 = I, lane 1 = R, lane 2 = S.
    i_col = ir[:, 0:1]
    r_col = ir[:, 1:2]
    s_col = N_POP - i_col - r_col
    lane = lax.broadcasted_iota(jnp.int32, ir.shape, 1)
    out_ref[...] = jnp.where(lane == 2, s_col, ir)


def init_params(key):
    """Deterministic synthetic init mirroring nn.Linear shapes:
    Linear(1,50), 4x Linear(50,50), Linear(50,2).  Weights stored (in,out),
    zero-padded into a (6,128,128) stack; biases into an (8,128) stack."""
    dims = [(1, 50), (50, 50), (50, 50), (50, 50), (50, 50), (50, 2)]
    w_stack = jnp.zeros((N_LAYERS, HP, HP), jnp.float32)
    b_stack = jnp.zeros((8, HP), jnp.float32)
    for li, (fan_in, fan_out) in enumerate(dims):
        key, kw, kb = jax.random.split(key, 3)
        bound = 1.0 / np.sqrt(fan_in)
        w = jax.random.uniform(kw, (fan_in, fan_out), jnp.float32, -bound, bound)
        b = jax.random.uniform(kb, (fan_out,), jnp.float32, -bound, bound)
        w_stack = w_stack.at[li, :fan_in, :fan_out].set(w)
        b_stack = b_stack.at[li, :fan_out].set(b)
    # beta / gamma nn.Parameters exist in the module but are unused in forward().
    key, kbeta, kgamma = jax.random.split(key, 3)
    beta = jax.random.uniform(kbeta, (1,), jnp.float32)
    gamma = jax.random.uniform(kgamma, (1,), jnp.float32)
    return (w_stack, b_stack), (beta, gamma)


def sir_inverse_net_forward(t, w_stack, b_stack, *, tb=512):
    """t: (B, 1) float32.  Returns (S_pred, I_pred, R_pred), each shape (B,)."""
    B = t.shape[0]
    # Batch tile: multiple of 8 sublanes, capped at `tb`; batch padded to a
    # multiple of TB so every grid step sees a full (TB, ...) block.
    TB = min(tb, ((B + 7) // 8) * 8)
    Bp = pl.cdiv(B, TB) * TB

    t_pad = jnp.zeros((Bp, 1), jnp.float32).at[:B, :].set(t.astype(jnp.float32))

    grid = (Bp // TB,)
    out_pad = pl.pallas_call(
        _sir_mlp_kernel,
        grid=grid,
        in_specs=[
            pl.BlockSpec((TB, 1), lambda i: (i, 0)),            # batch-tiled input
            pl.BlockSpec((N_LAYERS, HP, HP), lambda i: (0, 0, 0)),  # resident weights
            pl.BlockSpec((8, HP), lambda i: (0, 0)),            # resident biases
        ],
        out_specs=pl.BlockSpec((TB, HP), lambda i: (i, 0)),     # packed I/R/S tile
        out_shape=jax.ShapeDtypeStruct((Bp, HP), jnp.float32),
        compiler_params=pltpu.CompilerParams(
            dimension_semantics=("parallel",)),
    )(t_pad, w_stack, b_stack)

    i_pred = out_pad[:B, 0]
    r_pred = out_pad[:B, 1]
    s_pred = out_pad[:B, 2]
    return s_pred, i_pred, r_pred


def _reference_forward(t, w_stack, b_stack):
    """Pure-JAX reference (unpadded math) for correctness check."""
    x = t.astype(jnp.float32)
    dims = [(1, 50), (50, 50), (50, 50), (50, 50), (50, 50), (50, 2)]
    for li, (fi, fo) in enumerate(dims):
        w = w_stack[li, :fi, :fo]
        b = b_stack[li, :fo]
        x = x @ w + b
        if li < len(dims) - 1:
            x = jnp.maximum(x, 0.0)
    i_pred = x[:, 0]
    r_pred = x[:, 1]
    return N_POP - i_pred - r_pred, i_pred, r_pred


if __name__ == "__main__":
    key = jax.random.PRNGKey(0)
    kp, kt = jax.random.split(key)
    (w_stack, b_stack), _betagamma = init_params(kp)

    B = 8
    # time samples like np.linspace(0, 50, ...) reshaped to (B, 1)
    t_in = jnp.linspace(0.0, 50.0, B, dtype=jnp.float32).reshape(B, 1)

    S, I, R = sir_inverse_net_forward(t_in, w_stack, b_stack)
    jax.block_until_ready((S, I, R))

    S_ref, I_ref, R_ref = _reference_forward(t_in, w_stack, b_stack)
    np.testing.assert_allclose(np.asarray(I), np.asarray(I_ref), rtol=1e-5, atol=1e-5)
    np.testing.assert_allclose(np.asarray(R), np.asarray(R_ref), rtol=1e-5, atol=1e-5)
    np.testing.assert_allclose(np.asarray(S), np.asarray(S_ref), rtol=1e-5, atol=1e-4)

    print("KERNEL_OK")
</pallas_src>

<mosaic_0001>
module attributes {stable_mosaic.version = 11 : i64} {
  func.func @_sir_mlp_kernel(%arg0: i32, %arg1: memref<8x1xf32, #tpu.memory_space<vmem>>, %arg2: memref<6x128x128xf32, #tpu.memory_space<vmem>>, %arg3: memref<8x128xf32, #tpu.memory_space<vmem>>, %arg4: memref<8x128xf32, #tpu.memory_space<vmem>>) attributes {dimension_semantics = [#tpu.dimension_semantics<parallel>], iteration_bounds = array<i64: 1>, scalar_prefetch = 0 : i64, scratch_operands = 0 : i64, tpu.core_type = #tpu.core_type<tc>, window_params = [{transform_indices = @transform_0, window_bounds = array<i64: 8, 1>}, {pipeline_mode = #tpu.pipeline_mode<synchronous>, transform_indices = @transform_1, window_bounds = array<i64: 6, 128, 128>}, {pipeline_mode = #tpu.pipeline_mode<synchronous>, transform_indices = @transform_2, window_bounds = array<i64: 8, 128>}, {transform_indices = @transform_3, window_bounds = array<i64: 8, 128>}]} {
    %c0 = arith.constant 0 : index
    %c0_0 = arith.constant 0 : index
    %0 = vector.load %arg1[%c0, %c0_0] : memref<8x1xf32, #tpu.memory_space<vmem>>, vector<8x1xf32>
    %c0_1 = arith.constant 0 : index
    %c0_2 = arith.constant 0 : index
    %c0_3 = arith.constant 0 : index
    %1 = vector.load %arg2[%c0_1, %c0_2, %c0_3] : memref<6x128x128xf32, #tpu.memory_space<vmem>>, vector<1x1x128xf32>
    %2 = vector.shape_cast %1 : vector<1x1x128xf32> to vector<1x128xf32>
    %3 = vector.broadcast %0 : vector<8x1xf32> to vector<8x128xf32>
    %4 = vector.broadcast %2 : vector<1x128xf32> to vector<8x128xf32>
    %5 = arith.mulf %3, %4 : vector<8x128xf32>
    %c0_4 = arith.constant 0 : index
    %c0_5 = arith.constant 0 : index
    %6 = vector.load %arg3[%c0_4, %c0_5] : memref<8x128xf32, #tpu.memory_space<vmem>>, vector<1x128xf32>
    %7 = vector.broadcast %6 : vector<1x128xf32> to vector<8x128xf32>
    %8 = arith.addf %5, %7 : vector<8x128xf32>
    %cst = arith.constant 0.000000e+00 : f32
    %9 = vector.broadcast %cst : f32 to vector<8x128xf32>
    %10 = arith.maximumf %8, %9 : vector<8x128xf32>
    %c1 = arith.constant 1 : index
    %c0_6 = arith.constant 0 : index
    %c0_7 = arith.constant 0 : index
    %11 = vector.load %arg2[%c1, %c0_6, %c0_7] : memref<6x128x128xf32, #tpu.memory_space<vmem>>, vector<1x128x128xf32>
    %12 = vector.shape_cast %11 : vector<1x128x128xf32> to vector<128x128xf32>
    %cst_8 = arith.constant dense<0.000000e+00> : vector<8x128xf32>
    %13 = tpu.matmul %10, %12, %cst_8 {dimension_numbers = #tpu.dot_dimension_numbers<[1], [0], [0], [1], [0, 0, 1, 1], [], []>} : vector<8x128xf32>, vector<128x128xf32>, vector<8x128xf32> -> vector<8x128xf32>
    %c1_9 = arith.constant 1 : index
    %c0_10 = arith.constant 0 : index
    %14 = vector.load %arg3[%c1_9, %c0_10] : memref<8x128xf32, #tpu.memory_space<vmem>>, vector<1x128xf32>
    %15 = vector.broadcast %14 : vector<1x128xf32> to vector<8x128xf32>
    %16 = arith.addf %13, %15 : vector<8x128xf32>
    %cst_11 = arith.constant 0.000000e+00 : f32
    %17 = vector.broadcast %cst_11 : f32 to vector<8x128xf32>
    %18 = arith.maximumf %16, %17 : vector<8x128xf32>
    %c2 = arith.constant 2 : index
    %c0_12 = arith.constant 0 : index
    %c0_13 = arith.constant 0 : index
    %19 = vector.load %arg2[%c2, %c0_12, %c0_13] : memref<6x128x128xf32, #tpu.memory_space<vmem>>, vector<1x128x128xf32>
    %20 = vector.shape_cast %19 : vector<1x128x128xf32> to vector<128x128xf32>
    %cst_14 = arith.constant dense<0.000000e+00> : vector<8x128xf32>
    %21 = tpu.matmul %18, %20, %cst_14 {dimension_numbers = #tpu.dot_dimension_numbers<[1], [0], [0], [1], [0, 0, 1, 1], [], []>} : vector<8x128xf32>, vector<128x128xf32>, vector<8x128xf32> -> vector<8x128xf32>
    %c2_15 = arith.constant 2 : index
    %c0_16 = arith.constant 0 : index
    %22 = vector.load %arg3[%c2_15, %c0_16] : memref<8x128xf32, #tpu.memory_space<vmem>>, vector<1x128xf32>
    %23 = vector.broadcast %22 : vector<1x128xf32> to vector<8x128xf32>
    %24 = arith.addf %21, %23 : vector<8x128xf32>
    %cst_17 = arith.constant 0.000000e+00 : f32
    %25 = vector.broadcast %cst_17 : f32 to vector<8x128xf32>
    %26 = arith.maximumf %24, %25 : vector<8x128xf32>
    %c3 = arith.constant 3 : index
    %c0_18 = arith.constant 0 : index
    %c0_19 = arith.constant 0 : index
    %27 = vector.load %arg2[%c3, %c0_18, %c0_19] : memref<6x128x128xf32, #tpu.memory_space<vmem>>, vector<1x128x128xf32>
    %28 = vector.shape_cast %27 : vector<1x128x128xf32> to vector<128x128xf32>
    %cst_20 = arith.constant dense<0.000000e+00> : vector<8x128xf32>
    %29 = tpu.matmul %26, %28, %cst_20 {dimension_numbers = #tpu.dot_dimension_numbers<[1], [0], [0], [1], [0, 0, 1, 1], [], []>} : vector<8x128xf32>, vector<128x128xf32>, vector<8x128xf32> -> vector<8x128xf32>
    %c3_21 = arith.constant 3 : index
    %c0_22 = arith.constant 0 : index
    %30 = vector.load %arg3[%c3_21, %c0_22] : memref<8x128xf32, #tpu.memory_space<vmem>>, vector<1x128xf32>
    %31 = vector.broadcast %30 : vector<1x128xf32> to vector<8x128xf32>
    %32 = arith.addf %29, %31 : vector<8x128xf32>
    %cst_23 = arith.constant 0.000000e+00 : f32
    %33 = vector.broadcast %cst_23 : f32 to vector<8x128xf32>
    %34 = arith.maximumf %32, %33 : vector<8x128xf32>
    %c4 = arith.constant 4 : index
    %c0_24 = arith.constant 0 : index
    %c0_25 = arith.constant 0 : index
    %35 = vector.load %arg2[%c4, %c0_24, %c0_25] : memref<6x128x128xf32, #tpu.memory_space<vmem>>, vector<1x128x128xf32>
    %36 = vector.shape_cast %35 : vector<1x128x128xf32> to vector<128x128xf32>
    %cst_26 = arith.constant dense<0.000000e+00> : vector<8x128xf32>
    %37 = tpu.matmul %34, %36, %cst_26 {dimension_numbers = #tpu.dot_dimension_numbers<[1], [0], [0], [1], [0, 0, 1, 1], [], []>} : vector<8x128xf32>, vector<128x128xf32>, vector<8x128xf32> -> vector<8x128xf32>
    %c4_27 = arith.constant 4 : index
    %c0_28 = arith.constant 0 : index
    %38 = vector.load %arg3[%c4_27, %c0_28] : memref<8x128xf32, #tpu.memory_space<vmem>>, vector<1x128xf32>
    %39 = vector.broadcast %38 : vector<1x128xf32> to vector<8x128xf32>
    %40 = arith.addf %37, %39 : vector<8x128xf32>
    %cst_29 = arith.constant 0.000000e+00 : f32
    %41 = vector.broadcast %cst_29 : f32 to vector<8x128xf32>
    %42 = arith.maximumf %40, %41 : vector<8x128xf32>
    %c5 = arith.constant 5 : index
    %c0_30 = arith.constant 0 : index
    %c0_31 = arith.constant 0 : index
    %43 = vector.load %arg2[%c5, %c0_30, %c0_31] : memref<6x128x128xf32, #tpu.memory_space<vmem>>, vector<1x128x128xf32>
    %44 = vector.shape_cast %43 : vector<1x128x128xf32> to vector<128x128xf32>
    %cst_32 = arith.constant dense<0.000000e+00> : vector<8x128xf32>
    %45 = tpu.matmul %42, %44, %cst_32 {dimension_numbers = #tpu.dot_dimension_numbers<[1], [0], [0], [1], [0, 0, 1, 1], [], []>} : vector<8x128xf32>, vector<128x128xf32>, vector<8x128xf32> -> vector<8x128xf32>
    %c5_33 = arith.constant 5 : index
    %c0_34 = arith.constant 0 : index
    %46 = vector.load %arg3[%c5_33, %c0_34] : memref<8x128xf32, #tpu.memory_space<vmem>>, vector<1x128xf32>
    %47 = vector.broadcast %46 : vector<1x128xf32> to vector<8x128xf32>
    %48 = arith.addf %45, %47 : vector<8x128xf32>
    %49 = vector.extract_strided_slice %48 {offsets = [0, 0], sizes = [8, 1], strides = [1, 1]} : vector<8x128xf32> to vector<8x1xf32>
    %50 = vector.extract_strided_slice %48 {offsets = [0, 1], sizes = [8, 1], strides = [1, 1]} : vector<8x128xf32> to vector<8x1xf32>
    %cst_35 = arith.constant 1.000000e+03 : f32
    %51 = vector.broadcast %cst_35 : f32 to vector<8x1xf32>
    %52 = arith.subf %51, %49 : vector<8x1xf32>
    %53 = arith.subf %52, %50 : vector<8x1xf32>
    %54 = tpu.iota {dimensions = array<i32: 1>} : vector<8x128xi32>
    %c2_i32 = arith.constant 2 : i32
    %55 = vector.broadcast %c2_i32 : i32 to vector<8x128xi32>
    %56 = arith.cmpi eq, %54, %55 : vector<8x128xi32>
    %57 = vector.shape_cast %53 : vector<8x1xf32> to vector<8x1xf32>
    %58 = vector.broadcast %57 : vector<8x1xf32> to vector<8x128xf32>
    %59 = arith.select %56, %58, %48 : vector<8x128xi1>, vector<8x128xf32>
    %c0_36 = arith.constant 0 : index
    %c0_37 = arith.constant 0 : index
    %60 = vector.load %arg4[%c0_36, %c0_37] : memref<8x128xf32, #tpu.memory_space<vmem>>, vector<8x128xf32>
    tpu.vector_store %arg4[%c0_36, %c0_37], %59 {strides = array<i32>} : memref<8x128xf32, #tpu.memory_space<vmem>>, vector<8x128xf32>,
    return
  }
  func.func @transform_0(%arg0: i32) -> (i32, i32) {
    %c0_i32 = arith.constant 0 : i32
    %c0_i32_0 = arith.constant 0 : i32
    return %arg0, %c0_i32 : i32, i32
  }
  func.func @transform_1(%arg0: i32) -> (i32, i32, i32) {
    %c0_i32 = arith.constant 0 : i32
    %c0_i32_0 = arith.constant 0 : i32
    %c0_i32_1 = arith.constant 0 : i32
    %c0_i32_2 = arith.constant 0 : i32
    return %c0_i32, %c0_i32_0, %c0_i32_1 : i32, i32, i32
  }
  func.func @transform_2(%arg0: i32) -> (i32, i32) {
    %c0_i32 = arith.constant 0 : i32
    %c0_i32_0 = arith.constant 0 : i32
    %c0_i32_1 = arith.constant 0 : i32
    return %c0_i32, %c0_i32_0 : i32, i32
  }
  func.func @transform_3(%arg0: i32) -> (i32, i32) {
    %c0_i32 = arith.constant 0 : i32
    %c0_i32_0 = arith.constant 0 : i32
    return %arg0, %c0_i32 : i32, i32
  }
}

</mosaic_0001>

<llo_original>
// kernel: tpu_custom_call.1
$region0: #{tpu_custom_call.1}
  #allocation0 [shape = 'u32[]', space=smem, size = 0x4, offset = 0x4, fixed_abs, tag = 'smem constant byte address 0x4 - core index']
  #allocation1 [shape = 'u32[144,128]{1,0:T(1,128)}', space=vmem, size = 0x12000, scoped, tag = 'internal scratch']
  %s0 = inlined_call_operand.vmem [shape: f32[8,1], index: 0, kind: input, shape index: {}]
  %s1 = inlined_call_operand.hbm [shape: f32[6,128,128], index: 1, kind: input, shape index: {}]
  %s2 = inlined_call_operand.vmem [shape: f32[8,128], index: 2, kind: input, shape index: {}]
  %s3 = inlined_call_operand.hbm [shape: f32[8,128], index: 3, kind: output, shape index: {}]
  %s4 = sld [smem:[#allocation0]]
  $region26: #{tpu_custom_call.1} parent=0
    _
  %s6 = ssub.s32 1, %s4
  %s7 = scalar_select 0, %s6, %s4
  $region1: #{tpu_custom_call.1} parent=0
    #allocation2 [shape = 'u8[393216]{0}', space=vmem, size = 0x60000, scoped, tag = 'input window, operand 1, single buffered']
    #allocation3 [shape = 's32[1]{0}', space=sflag, size = 0x4, scoped, tag = 'scoped memory for tpu_custom_call.1']
    #allocation4 [shape = 's32[1]{0}', space=sflag, size = 0x4, scoped, tag = 'scoped memory for tpu_custom_call.1']
    #allocation5 [shape = 'u8[4096]{0}', space=vmem, size = 0x1000, scoped, tag = 'output window, operand 0, single buffered']
    %8 = vsyncpa [#allocation3], 0
    %9 = vsyncpa [#allocation4], 0
    // Predicated region
    $region2: #{tpu_custom_call.1} parent=1 // pred_check
      _
    $region3: #{tpu_custom_call.1} parent=1 // pred_check_branch
      %11 = sbr.rel (0) target = $region5
    $region4: #{tpu_custom_call.1} parent=1 // pred_region
      _
    $region5: #{tpu_custom_call.1} parent=1 // pred_fallthru
      _
    // Predicated region
    $region6: #{tpu_custom_call.1} parent=1 // pred_check
      _
    $region7: #{tpu_custom_call.1} parent=1 // pred_check_branch
      %13 = sbr.rel (0) target = $region9
    $region8: #{tpu_custom_call.1} parent=1 // pred_region
      %s15 = ssub.s32 12288, 12288
      %16 = vsyncadd [#allocation3], %s15
      %s17 = sshll.u32 [#allocation2], 4
      %s18 = int_to_ptr.vmem [resolvable:$true] %s17
      %23 = dma.hbm_to_vmem [thread:$0]  %s1, 12288, %s18, [#allocation3], 128, 128, 8
    $region9: #{tpu_custom_call.1} parent=1 // pred_fallthru
      _
    // Predicated region
    $region10: #{tpu_custom_call.1} parent=1 // pred_check
      _
    $region11: #{tpu_custom_call.1} parent=1 // pred_check_branch
      %25 = sbr.rel (0) target = $region13
    $region12: #{tpu_custom_call.1} parent=1 // pred_region
      _
    $region13: #{tpu_custom_call.1} parent=1 // pred_fallthru
      _
    // Predicated region
    $region14: #{tpu_custom_call.1} parent=1 // pred_check
      _
    $region15: #{tpu_custom_call.1} parent=1 // pred_check_branch
      %27 = sbr.rel (0) target = $region17
    $region16: #{tpu_custom_call.1} parent=1 // pred_region
      %28 = dma.done [#allocation3], 12288
    $region17: #{tpu_custom_call.1} parent=1 // pred_fallthru
      _
    %v29 = vld [vmem:[%s0] sm:$0xff]
    %v30 = vld [vmem:[#allocation2] sm:$0x1]
    %32 = vset.pattern.permute.xlu0 0
    %33 = vperm.xlu0 %32, %v29
    %v34 = vpop.permute.xlu0 %33
    %v36 = vlaneseq
    %v37 = vshrl.u32 %v36, 7
    %v38 = vsub.s32 0, %v37
    %v39 = vrot.slane %v30, %v38
    %v40 = vmul.f32 %v34, %v39
    %v41 = vld [vmem:[%s2] sm:$0x1]
    %v42 = vlaneseq
    %v43 = vshrl.u32 %v42, 7
    %v44 = vsub.s32 0, %v43
    %v45 = vrot.slane %v41, %v44
    %v46 = vadd.f32 %v40, %v45
    %v47 = vmax.f32 %v46, 0.0
    %s48 = scalar_lea.vmem [#allocation2], 128
    %v49 = vld [vmem:[%s48] sm:$0xff]
    %v50 = vld [vmem:[%s48 + $0x8] sm:$0xff]
    %v51 = vld [vmem:[%s48 + $0x10] sm:$0xff]
    %v52 = vld [vmem:[%s48 + $0x18] sm:$0xff]
    %v53 = vld [vmem:[%s48 + $0x20] sm:$0xff]
    %v54 = vld [vmem:[%s48 + $0x28] sm:$0xff]
    %v55 = vld [vmem:[%s48 + $0x30] sm:$0xff]
    %v56 = vld [vmem:[%s48 + $0x38] sm:$0xff]
    %v57 = vld [vmem:[%s48 + $0x40] sm:$0xff]
    %v58 = vld [vmem:[%s48 + $0x48] sm:$0xff]
    %v59 = vld [vmem:[%s48 + $0x50] sm:$0xff]
    %v60 = vld [vmem:[%s48 + $0x58] sm:$0xff]
    %v61 = vld [vmem:[%s48 + $0x60] sm:$0xff]
    %v62 = vld [vmem:[%s48 + $0x68] sm:$0xff]
    %v63 = vld [vmem:[%s48 + $0x70] sm:$0xff]
    %v64 = vld [vmem:[%s48 + $0x78] sm:$0xff]
    %v65 = vld [vmem:[%s2 + $0x1] sm:$0x1]
    %v66 = vlaneseq
    %v67 = vshrl.u32 %v66, 7
    %v68 = vsub.s32 0, %v67
    %v69 = vrot.slane %v65, %v68
    %70 = vmatprep.subr.mxu0 0.0
    %71 = vmatpush1.msra.mxu0 %v49
    %72 = vmatprep.subr.mxu0 0.0
    %73 = vmatpush1.msra.mxu0 %v50
    %74 = vmatprep.subr.mxu0 0.0
    %75 = vmatpush1.msra.mxu0 %v51
    %76 = vmatprep.subr.mxu0 0.0
    %77 = vmatpush1.msra.mxu0 %v52
    %78 = vmatprep.subr.mxu0 0.0
    %79 = vmatpush1.msra.mxu0 %v53
    %80 = vmatprep.subr.mxu0 0.0
    %81 = vmatpush1.msra.mxu0 %v54
    %82 = vmatprep.subr.mxu0 0.0
    %83 = vmatpush1.msra.mxu0 %v55
    %84 = vmatprep.subr.mxu0 0.0
    %85 = vmatpush1.msra.mxu0 %v56
    %86 = vmatprep.subr.mxu0 0.0
    %87 = vmatpush1.msra.mxu0 %v57
    %88 = vmatprep.subr.mxu0 0.0
    %89 = vmatpush1.msra.mxu0 %v58
    %90 = vmatprep.subr.mxu0 0.0
    %91 = vmatpush1.msra.mxu0 %v59
    %92 = vmatprep.subr.mxu0 0.0
    %93 = vmatpush1.msra.mxu0 %v60
    %94 = vmatprep.subr.mxu0 0.0
    %95 = vmatpush1.msra.mxu0 %v61
    %96 = vmatprep.subr.mxu0 0.0
    %97 = vmatpush1.msra.mxu0 %v62
    %98 = vmatprep.subr.mxu0 0.0
    %99 = vmatpush1.msra.mxu0 %v63
    %100 = vmatprep.subr.mxu0 0.0
    %101 = vmatpush1.msra.mxu0 %v64
    %102 = vmatprep.subr.mxu0 0.0
    %103 = vmatpush1.msra.mxu0 0.0
    %104 = vmatprep.subr.mxu0 0.0
    %105 = vmatpush1.msra.mxu0 0.0
    %106 = vmatprep.subr.mxu0 0.0
    %107 = vmatpush1.msra.mxu0 0.0
    %108 = vmatprep.subr.mxu0 0.0
    %109 = vmatpush1.msra.mxu0 0.0
    %110 = vmatprep.subr.mxu0 0.0
    %111 = vmatpush1.msra.mxu0 0.0
    %112 = vmatprep.subr.mxu0 0.0
    %113 = vmatpush1.msra.mxu0 0.0
    %114 = vmatprep.subr.mxu0 0.0
    %115 = vmatpush1.msra.mxu0 0.0
    %116 = vmatprep.subr.mxu0 0.0
    %117 = vmatpush1.msra.mxu0 0.0
    %118 = vmatprep.subr.mxu0 0.0
    %119 = vmatpush1.msra.mxu0 0.0
    %120 = vmatprep.subr.mxu0 0.0
    %121 = vmatpush1.msra.mxu0 0.0
    %122 = vmatprep.subr.mxu0 0.0
    %123 = vmatpush1.msra.mxu0 0.0
    %124 = vmatprep.subr.mxu0 0.0
    %125 = vmatpush1.msra.mxu0 0.0
    %126 = vmatprep.subr.mxu0 0.0
    %127 = vmatpush1.msra.mxu0 0.0
    %128 = vmatprep.subr.mxu0 0.0
    %129 = vmatpush1.msra.mxu0 0.0
    %130 = vmatprep.subr.mxu0 0.0
    %131 = vmatpush1.msra.mxu0 0.0
    %132 = vmatprep.subr.mxu0 0.0
    %133 = vmatpush1.msra.mxu0 0.0
    %134 = vmatprep.mubr.f32.mxu0 0.0
    %135 = vmatmul.mubr.f32.gmra.mrb[0].mxu0 %v47
    %v136 = vpop.f32.mrb[0].mxu0
    %v137 = vadd.f32 %v69, %v136
    %v138 = vpop.f32.mrb[0].mxu0
    %139 = vdwg.mxu0
    %v140 = vmax.f32 %v137, 0.0
    %s141 = scalar_lea.vmem [#allocation2], 256
    %v142 = vld [vmem:[%s141] sm:$0xff]
    %v143 = vld [vmem:[%s141 + $0x8] sm:$0xff]
    %v144 = vld [vmem:[%s141 + $0x10] sm:$0xff]
    %v145 = vld [vmem:[%s141 + $0x18] sm:$0xff]
    %v146 = vld [vmem:[%s141 + $0x20] sm:$0xff]
    %v147 = vld [vmem:[%s141 + $0x28] sm:$0xff]
    %v148 = vld [vmem:[%s141 + $0x30] sm:$0xff]
    %v149 = vld [vmem:[%s141 + $0x38] sm:$0xff]
    %v150 = vld [vmem:[%s141 + $0x40] sm:$0xff]
    %v151 = vld [vmem:[%s141 + $0x48] sm:$0xff]
    %v152 = vld [vmem:[%s141 + $0x50] sm:$0xff]
    %v153 = vld [vmem:[%s141 + $0x58] sm:$0xff]
    %v154 = vld [vmem:[%s141 + $0x60] sm:$0xff]
    %v155 = vld [vmem:[%s141 + $0x68] sm:$0xff]
    %v156 = vld [vmem:[%s141 + $0x70] sm:$0xff]
    %v157 = vld [vmem:[%s141 + $0x78] sm:$0xff]
    %v158 = vld [vmem:[%s2 + $0x2] sm:$0x1]
    %v159 = vlaneseq
    %v160 = vshrl.u32 %v159, 7
    %v161 = vsub.s32 0, %v160
    %v162 = vrot.slane %v158, %v161
    %163 = vmatprep.subr.mxu0 0.0
    %164 = vmatpush1.msra.mxu0 %v142
    %165 = vmatprep.subr.mxu0 0.0
    %166 = vmatpush1.msra.mxu0 %v143
    %167 = vmatprep.subr.mxu0 0.0
    %168 = vmatpush1.msra.mxu0 %v144
    %169 = vmatprep.subr.mxu0 0.0
    %170 = vmatpush1.msra.mxu0 %v145
    %171 = vmatprep.subr.mxu0 0.0
    %172 = vmatpush1.msra.mxu0 %v146
    %173 = vmatprep.subr.mxu0 0.0
    %174 = vmatpush1.msra.mxu0 %v147
    %175 = vmatprep.subr.mxu0 0.0
    %176 = vmatpush1.msra.mxu0 %v148
    %177 = vmatprep.subr.mxu0 0.0
    %178 = vmatpush1.msra.mxu0 %v149
    %179 = vmatprep.subr.mxu0 0.0
    %180 = vmatpush1.msra.mxu0 %v150
    %181 = vmatprep.subr.mxu0 0.0
    %182 = vmatpush1.msra.mxu0 %v151
    %183 = vmatprep.subr.mxu0 0.0
    %184 = vmatpush1.msra.mxu0 %v152
    %185 = vmatprep.subr.mxu0 0.0
    %186 = vmatpush1.msra.mxu0 %v153
    %187 = vmatprep.subr.mxu0 0.0
    %188 = vmatpush1.msra.mxu0 %v154
    %189 = vmatprep.subr.mxu0 0.0
    %190 = vmatpush1.msra.mxu0 %v155
    %191 = vmatprep.subr.mxu0 0.0
    %192 = vmatpush1.msra.mxu0 %v156
    %193 = vmatprep.subr.mxu0 0.0
    %194 = vmatpush1.msra.mxu0 %v157
    %195 = vmatprep.subr.mxu0 0.0
    %196 = vmatpush1.msra.mxu0 0.0
    %197 = vmatprep.subr.mxu0 0.0
    %198 = vmatpush1.msra.mxu0 0.0
    %199 = vmatprep.subr.mxu0 0.0
    %200 = vmatpush1.msra.mxu0 0.0
    %201 = vmatprep.subr.mxu0 0.0
    %202 = vmatpush1.msra.mxu0 0.0
    %203 = vmatprep.subr.mxu0 0.0
    %204 = vmatpush1.msra.mxu0 0.0
    %205 = vmatprep.subr.mxu0 0.0
    %206 = vmatpush1.msra.mxu0 0.0
    %207 = vmatprep.subr.mxu0 0.0
    %208 = vmatpush1.msra.mxu0 0.0
    %209 = vmatprep.subr.mxu0 0.0
    %210 = vmatpush1.msra.mxu0 0.0
    %211 = vmatprep.subr.mxu0 0.0
    %212 = vmatpush1.msra.mxu0 0.0
    %213 = vmatprep.subr.mxu0 0.0
    %214 = vmatpush1.msra.mxu0 0.0
    %215 = vmatprep.subr.mxu0 0.0
    %216 = vmatpush1.msra.mxu0 0.0
    %217 = vmatprep.subr.mxu0 0.0
    %218 = vmatpush1.msra.mxu0 0.0
    %219 = vmatprep.subr.mxu0 0.0
    %220 = vmatpush1.msra.mxu0 0.0
    %221 = vmatprep.subr.mxu0 0.0
    %222 = vmatpush1.msra.mxu0 0.0
    %223 = vmatprep.subr.mxu0 0.0
    %224 = vmatpush1.msra.mxu0 0.0
    %225 = vmatprep.subr.mxu0 0.0
    %226 = vmatpush1.msra.mxu0 0.0
    %227 = vmatprep.mubr.f32.mxu0 0.0
    %228 = vmatmul.mubr.f32.gmra.mrb[0].mxu0 %v140
    %v229 = vpop.f32.mrb[0].mxu0
    %v230 = vadd.f32 %v162, %v229
    %v231 = vpop.f32.mrb[0].mxu0
    %232 = vdwg.mxu0
    %v233 = vmax.f32 %v230, 0.0
    %s234 = scalar_lea.vmem [#allocation2], 384
    %v235 = vld [vmem:[%s234] sm:$0xff]
    %v236 = vld [vmem:[%s234 + $0x8] sm:$0xff]
    %v237 = vld [vmem:[%s234 + $0x10] sm:$0xff]
    %v238 = vld [vmem:[%s234 + $0x18] sm:$0xff]
    %v239 = vld [vmem:[%s234 + $0x20] sm:$0xff]
    %v240 = vld [vmem:[%s234 + $0x28] sm:$0xff]
    %v241 = vld [vmem:[%s234 + $0x30] sm:$0xff]
    %v242 = vld [vmem:[%s234 + $0x38] sm:$0xff]
    %v243 = vld [vmem:[%s234 + $0x40] sm:$0xff]
    %v244 = vld [vmem:[%s234 + $0x48] sm:$0xff]
    %v245 = vld [vmem:[%s234 + $0x50] sm:$0xff]
    %v246 = vld [vmem:[%s234 + $0x58] sm:$0xff]
    %v247 = vld [vmem:[%s234 + $0x60] sm:$0xff]
    %v248 = vld [vmem:[%s234 + $0x68] sm:$0xff]
    %v249 = vld [vmem:[%s234 + $0x70] sm:$0xff]
    %v250 = vld [vmem:[%s234 + $0x78] sm:$0xff]
    %v251 = vld [vmem:[%s2 + $0x3] sm:$0x1]
    %v252 = vlaneseq
    %v253 = vshrl.u32 %v252, 7
    %v254 = vsub.s32 0, %v253
    %v255 = vrot.slane %v251, %v254
    %256 = vmatprep.subr.mxu0 0.0
    %257 = vmatpush1.msra.mxu0 %v235
    %258 = vmatprep.subr.mxu0 0.0
    %259 = vmatpush1.msra.mxu0 %v236
    %260 = vmatprep.subr.mxu0 0.0
    %261 = vmatpush1.msra.mxu0 %v237
    %262 = vmatprep.subr.mxu0 0.0
    %263 = vmatpush1.msra.mxu0 %v238
    %264 = vmatprep.subr.mxu0 0.0
    %265 = vmatpush1.msra.mxu0 %v239
    %266 = vmatprep.subr.mxu0 0.0
    %267 = vmatpush1.msra.mxu0 %v240
    %268 = vmatprep.subr.mxu0 0.0
    %269 = vmatpush1.msra.mxu0 %v241
    %270 = vmatprep.subr.mxu0 0.0
    %271 = vmatpush1.msra.mxu0 %v242
    %272 = vmatprep.subr.mxu0 0.0
    %273 = vmatpush1.msra.mxu0 %v243
    %274 = vmatprep.subr.mxu0 0.0
    %275 = vmatpush1.msra.mxu0 %v244
    %276 = vmatprep.subr.mxu0 0.0
    %277 = vmatpush1.msra.mxu0 %v245
    %278 = vmatprep.subr.mxu0 0.0
    %279 = vmatpush1.msra.mxu0 %v246
    %280 = vmatprep.subr.mxu0 0.0
    %281 = vmatpush1.msra.mxu0 %v247
    %282 = vmatprep.subr.mxu0 0.0
    %283 = vmatpush1.msra.mxu0 %v248
    %284 = vmatprep.subr.mxu0 0.0
    %285 = vmatpush1.msra.mxu0 %v249
    %286 = vmatprep.subr.mxu0 0.0
    %287 = vmatpush1.msra.mxu0 %v250
    %288 = vmatprep.subr.mxu0 0.0
    %289 = vmatpush1.msra.mxu0 0.0
    %290 = vmatprep.subr.mxu0 0.0
    %291 = vmatpush1.msra.mxu0 0.0
    %292 = vmatprep.subr.mxu0 0.0
    %293 = vmatpush1.msra.mxu0 0.0
    %294 = vmatprep.subr.mxu0 0.0
    %295 = vmatpush1.msra.mxu0 0.0
    %296 = vmatprep.subr.mxu0 0.0
    %297 = vmatpush1.msra.mxu0 0.0
    %298 = vmatprep.subr.mxu0 0.0
    %299 = vmatpush1.msra.mxu0 0.0
    %300 = vmatprep.subr.mxu0 0.0
    %301 = vmatpush1.msra.mxu0 0.0
    %302 = vmatprep.subr.mxu0 0.0
    %303 = vmatpush1.msra.mxu0 0.0
    %304 = vmatprep.subr.mxu0 0.0
    %305 = vmatpush1.msra.mxu0 0.0
    %306 = vmatprep.subr.mxu0 0.0
    %307 = vmatpush1.msra.mxu0 0.0
    %308 = vmatprep.subr.mxu0 0.0
    %309 = vmatpush1.msra.mxu0 0.0
    %310 = vmatprep.subr.mxu0 0.0
    %311 = vmatpush1.msra.mxu0 0.0
    %312 = vmatprep.subr.mxu0 0.0
    %313 = vmatpush1.msra.mxu0 0.0
    %314 = vmatprep.subr.mxu0 0.0
    %315 = vmatpush1.msra.mxu0 0.0
    %316 = vmatprep.subr.mxu0 0.0
    %317 = vmatpush1.msra.mxu0 0.0
    %318 = vmatprep.subr.mxu0 0.0
    %319 = vmatpush1.msra.mxu0 0.0
    %320 = vmatprep.mubr.f32.mxu0 0.0
    %321 = vmatmul.mubr.f32.gmra.mrb[0].mxu0 %v233
    %v322 = vpop.f32.mrb[0].mxu0
    %v323 = vadd.f32 %v255, %v322
    %v324 = vpop.f32.mrb[0].mxu0
    %325 = vdwg.mxu0
    %v326 = vmax.f32 %v323, 0.0
    %s327 = scalar_lea.vmem [#allocation2], 512
    %v328 = vld [vmem:[%s327] sm:$0xff]
    %v329 = vld [vmem:[%s327 + $0x8] sm:$0xff]
    %v330 = vld [vmem:[%s327 + $0x10] sm:$0xff]
    %v331 = vld [vmem:[%s327 + $0x18] sm:$0xff]
    %v332 = vld [vmem:[%s327 + $0x20] sm:$0xff]
    %v333 = vld [vmem:[%s327 + $0x28] sm:$0xff]
    %v334 = vld [vmem:[%s327 + $0x30] sm:$0xff]
    %v335 = vld [vmem:[%s327 + $0x38] sm:$0xff]
    %v336 = vld [vmem:[%s327 + $0x40] sm:$0xff]
    %v337 = vld [vmem:[%s327 + $0x48] sm:$0xff]
    %v338 = vld [vmem:[%s327 + $0x50] sm:$0xff]
    %v339 = vld [vmem:[%s327 + $0x58] sm:$0xff]
    %v340 = vld [vmem:[%s327 + $0x60] sm:$0xff]
    %v341 = vld [vmem:[%s327 + $0x68] sm:$0xff]
    %v342 = vld [vmem:[%s327 + $0x70] sm:$0xff]
    %v343 = vld [vmem:[%s327 + $0x78] sm:$0xff]
    %v344 = vld [vmem:[%s2 + $0x4] sm:$0x1]
    %v345 = vlaneseq
    %v346 = vshrl.u32 %v345, 7
    %v347 = vsub.s32 0, %v346
    %v348 = vrot.slane %v344, %v347
    %349 = vmatprep.subr.mxu0 0.0
    %350 = vmatpush1.msra.mxu0 %v328
    %351 = vmatprep.subr.mxu0 0.0
    %352 = vmatpush1.msra.mxu0 %v329
    %353 = vmatprep.subr.mxu0 0.0
    %354 = vmatpush1.msra.mxu0 %v330
    %355 = vmatprep.subr.mxu0 0.0
    %356 = vmatpush1.msra.mxu0 %v331
    %357 = vmatprep.subr.mxu0 0.0
    %358 = vmatpush1.msra.mxu0 %v332
    %359 = vmatprep.subr.mxu0 0.0
    %360 = vmatpush1.msra.mxu0 %v333
    %361 = vmatprep.subr.mxu0 0.0
    %362 = vmatpush1.msra.mxu0 %v334
    %363 = vmatprep.subr.mxu0 0.0
    %364 = vmatpush1.msra.mxu0 %v335
    %365 = vmatprep.subr.mxu0 0.0
    %366 = vmatpush1.msra.mxu0 %v336
    %367 = vmatprep.subr.mxu0 0.0
    %368 = vmatpush1.msra.mxu0 %v337
    %369 = vmatprep.subr.mxu0 0.0
    %370 = vmatpush1.msra.mxu0 %v338
    %371 = vmatprep.subr.mxu0 0.0
    %372 = vmatpush1.msra.mxu0 %v339
    %373 = vmatprep.subr.mxu0 0.0
    %374 = vmatpush1.msra.mxu0 %v340
    %375 = vmatprep.subr.mxu0 0.0
    %376 = vmatpush1.msra.mxu0 %v341
    %377 = vmatprep.subr.mxu0 0.0
    %378 = vmatpush1.msra.mxu0 %v342
    %379 = vmatprep.subr.mxu0 0.0
    %380 = vmatpush1.msra.mxu0 %v343
    %381 = vmatprep.subr.mxu0 0.0
    %382 = vmatpush1.msra.mxu0 0.0
    %383 = vmatprep.subr.mxu0 0.0
    %384 = vmatpush1.msra.mxu0 0.0
    %385 = vmatprep.subr.mxu0 0.0
    %386 = vmatpush1.msra.mxu0 0.0
    %387 = vmatprep.subr.mxu0 0.0
    %388 = vmatpush1.msra.mxu0 0.0
    %389 = vmatprep.subr.mxu0 0.0
    %390 = vmatpush1.msra.mxu0 0.0
    %391 = vmatprep.subr.mxu0 0.0
    %392 = vmatpush1.msra.mxu0 0.0
    %393 = vmatprep.subr.mxu0 0.0
    %394 = vmatpush1.msra.mxu0 0.0
    %395 = vmatprep.subr.mxu0 0.0
    %396 = vmatpush1.msra.mxu0 0.0
    %397 = vmatprep.subr.mxu0 0.0
    %398 = vmatpush1.msra.mxu0 0.0
    %399 = vmatprep.subr.mxu0 0.0
    %400 = vmatpush1.msra.mxu0 0.0
    %401 = vmatprep.subr.mxu0 0.0
    %402 = vmatpush1.msra.mxu0 0.0
    %403 = vmatprep.subr.mxu0 0.0
    %404 = vmatpush1.msra.mxu0 0.0
    %405 = vmatprep.subr.mxu0 0.0
    %406 = vmatpush1.msra.mxu0 0.0
    %407 = vmatprep.subr.mxu0 0.0
    %408 = vmatpush1.msra.mxu0 0.0
    %409 = vmatprep.subr.mxu0 0.0
    %410 = vmatpush1.msra.mxu0 0.0
    %411 = vmatprep.subr.mxu0 0.0
    %412 = vmatpush1.msra.mxu0 0.0
    %413 = vmatprep.mubr.f32.mxu0 0.0
    %414 = vmatmul.mubr.f32.gmra.mrb[0].mxu0 %v326
    %v415 = vpop.f32.mrb[0].mxu0
    %v416 = vadd.f32 %v348, %v415
    %v417 = vpop.f32.mrb[0].mxu0
    %418 = vdwg.mxu0
    %v419 = vmax.f32 %v416, 0.0
    %s420 = scalar_lea.vmem [#allocation2], 640
    %v421 = vld [vmem:[%s420] sm:$0xff]
    %v422 = vld [vmem:[%s420 + $0x8] sm:$0xff]
    %v423 = vld [vmem:[%s420 + $0x10] sm:$0xff]
    %v424 = vld [vmem:[%s420 + $0x18] sm:$0xff]
    %v425 = vld [vmem:[%s420 + $0x20] sm:$0xff]
    %v426 = vld [vmem:[%s420 + $0x28] sm:$0xff]
    %v427 = vld [vmem:[%s420 + $0x30] sm:$0xff]
    %v428 = vld [vmem:[%s420 + $0x38] sm:$0xff]
    %v429 = vld [vmem:[%s420 + $0x40] sm:$0xff]
    %v430 = vld [vmem:[%s420 + $0x48] sm:$0xff]
    %v431 = vld [vmem:[%s420 + $0x50] sm:$0xff]
    %v432 = vld [vmem:[%s420 + $0x58] sm:$0xff]
    %v433 = vld [vmem:[%s420 + $0x60] sm:$0xff]
    %v434 = vld [vmem:[%s420 + $0x68] sm:$0xff]
    %v435 = vld [vmem:[%s420 + $0x70] sm:$0xff]
    %v436 = vld [vmem:[%s420 + $0x78] sm:$0xff]
    %v437 = vld [vmem:[%s2 + $0x5] sm:$0x1]
    %v438 = vlaneseq
    %v439 = vshrl.u32 %v438, 7
    %v440 = vsub.s32 0, %v439
    %v441 = vrot.slane %v437, %v440
    %442 = vmatprep.subr.mxu0 0.0
    %443 = vmatpush1.msra.mxu0 %v421
    %444 = vmatprep.subr.mxu0 0.0
    %445 = vmatpush1.msra.mxu0 %v422
    %446 = vmatprep.subr.mxu0 0.0
    %447 = vmatpush1.msra.mxu0 %v423
    %448 = vmatprep.subr.mxu0 0.0
    %449 = vmatpush1.msra.mxu0 %v424
    %450 = vmatprep.subr.mxu0 0.0
    %451 = vmatpush1.msra.mxu0 %v425
    %452 = vmatprep.subr.mxu0 0.0
    %453 = vmatpush1.msra.mxu0 %v426
    %454 = vmatprep.subr.mxu0 0.0
    %455 = vmatpush1.msra.mxu0 %v427
    %456 = vmatprep.subr.mxu0 0.0
    %457 = vmatpush1.msra.mxu0 %v428
    %458 = vmatprep.subr.mxu0 0.0
    %459 = vmatpush1.msra.mxu0 %v429
    %460 = vmatprep.subr.mxu0 0.0
    %461 = vmatpush1.msra.mxu0 %v430
    %462 = vmatprep.subr.mxu0 0.0
    %463 = vmatpush1.msra.mxu0 %v431
    %464 = vmatprep.subr.mxu0 0.0
    %465 = vmatpush1.msra.mxu0 %v432
    %466 = vmatprep.subr.mxu0 0.0
    %467 = vmatpush1.msra.mxu0 %v433
    %468 = vmatprep.subr.mxu0 0.0
    %469 = vmatpush1.msra.mxu0 %v434
    %470 = vmatprep.subr.mxu0 0.0
    %471 = vmatpush1.msra.mxu0 %v435
    %472 = vmatprep.subr.mxu0 0.0
    %473 = vmatpush1.msra.mxu0 %v436
    %474 = vmatprep.subr.mxu0 0.0
    %475 = vmatpush1.msra.mxu0 0.0
    %476 = vmatprep.subr.mxu0 0.0
    %477 = vmatpush1.msra.mxu0 0.0
    %478 = vmatprep.subr.mxu0 0.0
    %479 = vmatpush1.msra.mxu0 0.0
    %480 = vmatprep.subr.mxu0 0.0
    %481 = vmatpush1.msra.mxu0 0.0
    %482 = vmatprep.subr.mxu0 0.0
    %483 = vmatpush1.msra.mxu0 0.0
    %484 = vmatprep.subr.mxu0 0.0
    %485 = vmatpush1.msra.mxu0 0.0
    %486 = vmatprep.subr.mxu0 0.0
    %487 = vmatpush1.msra.mxu0 0.0
    %488 = vmatprep.subr.mxu0 0.0
    %489 = vmatpush1.msra.mxu0 0.0
    %490 = vmatprep.subr.mxu0 0.0
    %491 = vmatpush1.msra.mxu0 0.0
    %492 = vmatprep.subr.mxu0 0.0
    %493 = vmatpush1.msra.mxu0 0.0
    %494 = vmatprep.subr.mxu0 0.0
    %495 = vmatpush1.msra.mxu0 0.0
    %496 = vmatprep.subr.mxu0 0.0
    %497 = vmatpush1.msra.mxu0 0.0
    %498 = vmatprep.subr.mxu0 0.0
    %499 = vmatpush1.msra.mxu0 0.0
    %500 = vmatprep.subr.mxu0 0.0
    %501 = vmatpush1.msra.mxu0 0.0
    %502 = vmatprep.subr.mxu0 0.0
    %503 = vmatpush1.msra.mxu0 0.0
    %504 = vmatprep.subr.mxu0 0.0
    %505 = vmatpush1.msra.mxu0 0.0
    %506 = vmatprep.mubr.f32.mxu0 0.0
    %507 = vmatmul.mubr.f32.gmra.mrb[0].mxu0 %v419
    %v508 = vpop.f32.mrb[0].mxu0
    %v509 = vadd.f32 %v441, %v508
    %v510 = vpop.f32.mrb[0].mxu0
    %511 = vdwg.mxu0
    %v512 = vsub.f32 1000.0, %v509
    %514 = vrot.lane.b32.xlu0 %v509, 127
    %v515 = vpop.permute.xlu0 %514
    %v517 = vsub.f32 %v512, %v515
    %v518 = vlaneseq
    %v519 = vand.u32 %v518, 127
    %vm520 = vcmp.eq.s32.totalorder %v519, 2
    %522 = vset.pattern.permute.xlu0 0
    %523 = vperm.xlu0 %522, %v517
    %v524 = vpop.permute.xlu0 %523
    %v526 = vsel %vm520, %v524, %v509
    %527 = vst [vmem:[#allocation5] sm:$0xff] %v526
    // Predicated region
    $region18: #{tpu_custom_call.1} parent=1 // pred_check
      _
    $region19: #{tpu_custom_call.1} parent=1 // pred_check_branch
      %529 = sbr.rel (0) target = $region21
    $region20: #{tpu_custom_call.1} parent=1 // pred_region
      %s531 = ssub.s32 128, 128
      %532 = vsyncadd [#allocation4], %s531
      %s534 = sshll.u32 [#allocation5], 4
      %s535 = int_to_ptr.vmem [resolvable:$true] %s534
      %537 = dma.vmem_to_hbm [thread:$0]  %s535, 128, %s3, [#allocation4]
    $region21: #{tpu_custom_call.1} parent=1 // pred_fallthru
      _
    // Predicated region
    $region22: #{tpu_custom_call.1} parent=1 // pred_check
      _
    $region23: #{tpu_custom_call.1} parent=1 // pred_check_branch
      %539 = sbr.rel (0) target = $region25
    $region24: #{tpu_custom_call.1} parent=1 // pred_region
      %540 = dma.done [#allocation4], 128
    $region25: #{tpu_custom_call.1} parent=1 // pred_fallthru
      _
    %541 = vsyncpa [#allocation3], 1
    %542 = vsyncpa [#allocation4], 1

</llo_original>
